<compile_context>
chip_gen: v7x
topology: tpu7x:2x2x1
jax: 0.10.0
libtpu: 0.0.40
codegen_flags: <defaults>
</compile_context>

<pallas_src>
import jax
import jax.numpy as jnp
from jax.experimental import pallas as pl
from jax.experimental.pallas import tpu as pltpu


def _relu_colmean_kernel(x_ref, o_ref):
    # x_ref: (1, 3, 4) f32 VMEM block (raw input, no replication).
    # o_ref: (2, 4) f32 VMEM block; row-major flatten gives the (8,) result.
    r = jnp.maximum(x_ref[0], 0.0)                         # ReLU (VPU), (3, 4)
    s = jnp.sum(r, axis=0, keepdims=True) * (1.0 / 3.0)    # sublane reduce + const mul, (1, 4)
    o_ref[...] = jnp.broadcast_to(s, (2, 4))               # result is [s, s]


def model_forward(x, dim: int = 0):
    """x: (1, 3, 4) float32 -> (8,) float32, matching the PyTorch forward.

    The PyTorch spec's `dim` is a free variable; for this input shape the
    result is identical for dim in {0, 1, 2} (and their negatives), so `dim`
    is accepted for interface parity but does not change the computation.
    """
    del dim  # result is dim-invariant for x.shape == (1, 3, 4); see docstring.
    out2x4 = pl.pallas_call(
        _relu_colmean_kernel,
        out_shape=jax.ShapeDtypeStruct((2, 4), jnp.float32),
        in_specs=[pl.BlockSpec(memory_space=pltpu.MemorySpace.VMEM)],
        out_specs=pl.BlockSpec(memory_space=pltpu.MemorySpace.VMEM),
    )(x)
    return out2x4.reshape(8)  # metadata-only reshape -> (8,)


def _reference(x, dim):
    # Faithful pure-JAX reference of the PyTorch module (for sanity checking).
    y = jnp.concatenate([x, x, x, x], axis=dim)
    y = jnp.maximum(y, 0.0).reshape(-1, 8)
    return jnp.mean(y, axis=0)


if __name__ == "__main__":
    key = jax.random.PRNGKey(0)
    x = jax.random.normal(key, (1, 3, 4), dtype=jnp.float32)

    out = model_forward(x)
    out = jax.block_until_ready(out)
    assert out.shape == (8,), out.shape

    # Result is invariant to the (unspecified) concat `dim` for this input
    # shape; verify against the faithful reference for every valid dim.
    for d in (0, 1, 2):
        ref = _reference(x, d)
        assert jnp.allclose(out, ref, atol=1e-6, rtol=1e-6), (d, out, ref)

    print("KERNEL_OK")
</pallas_src>

<mosaic_0001>
module attributes {stable_mosaic.version = 11 : i64} {
  func.func @_relu_colmean_kernel(%arg0: memref<1x3x4xf32, #tpu.memory_space<vmem>>, %arg1: memref<2x4xf32, #tpu.memory_space<vmem>>) attributes {dimension_semantics = [], scalar_prefetch = 0 : i64, scratch_operands = 0 : i64, tpu.core_type = #tpu.core_type<tc>} {
    %c0 = arith.constant 0 : index
    %c0_0 = arith.constant 0 : index
    %c0_1 = arith.constant 0 : index
    %0 = vector.load %arg0[%c0, %c0_0, %c0_1] : memref<1x3x4xf32, #tpu.memory_space<vmem>>, vector<1x3x4xf32>
    %1 = vector.shape_cast %0 : vector<1x3x4xf32> to vector<3x4xf32>
    %cst = arith.constant 0.000000e+00 : f32
    %2 = vector.broadcast %cst : f32 to vector<3x4xf32>
    %3 = arith.maximumf %1, %2 : vector<3x4xf32>
    %cst_2 = arith.constant dense<0.000000e+00> : vector<4xf32>
    %4 = vector.multi_reduction <add>, %3, %cst_2 [0] : vector<3x4xf32> to vector<4xf32>
    %5 = vector.shape_cast %4 : vector<4xf32> to vector<1x4xf32>
    %cst_3 = arith.constant 0.333333343 : f32
    %6 = vector.broadcast %cst_3 : f32 to vector<1x4xf32>
    %7 = arith.mulf %5, %6 : vector<1x4xf32>
    %8 = vector.shape_cast %7 : vector<1x4xf32> to vector<1x4xf32>
    %9 = vector.broadcast %8 : vector<1x4xf32> to vector<2x4xf32>
    %c0_4 = arith.constant 0 : index
    %c0_5 = arith.constant 0 : index
    %10 = vector.load %arg1[%c0_4, %c0_5] : memref<2x4xf32, #tpu.memory_space<vmem>>, vector<2x4xf32>
    tpu.vector_store %arg1[%c0_4, %c0_5], %9 {strides = array<i32>} : memref<2x4xf32, #tpu.memory_space<vmem>>, vector<2x4xf32>,
    return
  }
}

</mosaic_0001>

<llo_original>
// kernel: tpu_custom_call.1
$region0: #{tpu_custom_call.1}
  #allocation0 [shape = 'u32[]', space=smem, size = 0x4, offset = 0x4, fixed_abs, tag = 'smem constant byte address 0x4 - core index']
  #allocation1 [shape = 'u32[144,128]{1,0:T(1,128)}', space=vmem, size = 0x12000, scoped, tag = 'internal scratch']
  %s0 = inlined_call_operand.vmem [shape: f32[1,3,4], index: 0, kind: input, shape index: {}]
  %s1 = inlined_call_operand.hbm [shape: f32[2,4], index: 1, kind: output, shape index: {}]
  %s2 = sld [smem:[#allocation0]]
  $region14: #{tpu_custom_call.1} parent=0
    _
  %s4 = ssub.s32 1, %s2
  %s5 = scalar_select 0, %s4, %s2
  $region1: #{tpu_custom_call.1} parent=0
    #allocation2 [shape = 'u8[1024]{0}', space=vmem, size = 0x400, scoped, tag = 'output window, operand 0, single buffered']
    #allocation3 [shape = 's32[1]{0}', space=sflag, size = 0x4, scoped, tag = 'scoped memory for tpu_custom_call.1']
    %6 = vsyncpa [#allocation3], 0
    // Predicated region
    $region2: #{tpu_custom_call.1} parent=1 // pred_check
      _
    $region3: #{tpu_custom_call.1} parent=1 // pred_check_branch
      %8 = sbr.rel (0) target = $region5
    $region4: #{tpu_custom_call.1} parent=1 // pred_region
      _
    $region5: #{tpu_custom_call.1} parent=1 // pred_fallthru
      _
    %v9 = vld [vmem:[%s0] sm:$0x7]
    %v10 = vmax.f32 %v9, 0.0
    %vm11 = vcmask 26624
    %v12 = vsel %vm11, %v10, 0.0
    %v13 = vrot.slane %v12, 4
    %v14 = vadd.f32 %v12, %v13
    %v15 = vrot.slane %v14, 2
    %v16 = vadd.f32 %v14, %v15
    %v17 = vrot.slane %v16, 1
    %v18 = vadd.f32 %v16, %v17
    %v19 = vmul.f32 %v18, 0.33333334
    %vm20 = vcmask 25600
    %21 = vst.msk [vmem:[#allocation2] sm:$0x3] %vm20, %v19
    // Predicated region
    $region6: #{tpu_custom_call.1} parent=1 // pred_check
      _
    $region7: #{tpu_custom_call.1} parent=1 // pred_check_branch
      %23 = sbr.rel (0) target = $region9
    $region8: #{tpu_custom_call.1} parent=1 // pred_region
      %s25 = ssub.s32 32, 32
      %26 = vsyncadd [#allocation3], %s25
      %s28 = sshll.u32 [#allocation2], 4
      %s29 = int_to_ptr.vmem [resolvable:$true] %s28
      %31 = dma.vmem_to_hbm [thread:$0]  %s29, 32, %s1, [#allocation3]
    $region9: #{tpu_custom_call.1} parent=1 // pred_fallthru
      _
    // Predicated region
    $region10: #{tpu_custom_call.1} parent=1 // pred_check
      _
    $region11: #{tpu_custom_call.1} parent=1 // pred_check_branch
      %33 = sbr.rel (0) target = $region13
    $region12: #{tpu_custom_call.1} parent=1 // pred_region
      %34 = dma.done [#allocation3], 32
    $region13: #{tpu_custom_call.1} parent=1 // pred_fallthru
      _
    %35 = vsyncpa [#allocation3], 1

</llo_original>
